<compile_context>
chip_gen: v5e
topology: v5e:2x2
jax: 0.10.0
libtpu: 0.0.40
codegen_flags: <defaults>
</compile_context>

<pallas_src>
import functools

import jax
import jax.numpy as jnp
from jax.experimental import pallas as pl
from jax.experimental.pallas import tpu as pltpu


def _round_up(x, m):
    return (x + m - 1) // m * m


def _ceil_div(a, b):
    return -(-a // b)


def _choose_tiling(M, tm_max):
    """Pick (tile_m, padded_M, grid_len) with bounded padding and >=2 steps."""
    M8 = _round_up(max(M, 8), 8)          # sublane alignment
    G = max(1, _ceil_div(M8, tm_max))
    if M8 >= 16:
        G = max(G, 2)                     # keep both v7x TensorCores busy
    tm = _round_up(_ceil_div(M8, G), 8)   # waste <= ~8 rows per grid step
    M_pad = G * tm
    return tm, M_pad, G


def _lane_group_reduce(x, op, num_groups, group_width):
    """Reduce over `num_groups` groups of `group_width` lanes.

    x: (rows, num_groups * group_width); lane k belongs to group
    k // group_width at within-group position k % group_width.  Returns same
    shape with every lane holding the reduction over all groups for its
    within-group position.  Implemented with circular lane rotations (XLU) so
    data never leaves its native (sublane, lane) layout.
    """
    if num_groups == 1:
        return x
    total = num_groups * group_width
    if (num_groups & (num_groups - 1)) == 0:
        # power-of-two group count: log2(num_groups) doubling steps
        shift = group_width
        while shift < total:
            x = op(x, pltpu.roll(x, shift=shift, axis=1))
            shift *= 2
        return x
    # general case: num_groups - 1 sequential rotations
    acc = x
    r = x
    for _ in range(num_groups - 1):
        r = pltpu.roll(r, shift=group_width, axis=1)
        acc = op(acc, r)
    return acc


def _comp_embed_kernel(idx_ref, code_ref, book_ref, out_ref, *,
                       num_codebook, num_codeword, num_embeddings):
    # idx_ref : (tm, 1)   int32 token ids for this tile
    # code_ref: (E, K)    VMEM-resident flattened code table (K = B*Wc)
    # book_ref: (K, D)    VMEM-resident flattened codebook
    # out_ref : (tm, D)
    B, Wc, E = num_codebook, num_codeword, num_embeddings
    tm = idx_ref.shape[0]

    # --- Fused row gather: one-hot(idx) @ code_table on the MXU ------------
    idx = idx_ref[...]                                            # (tm, 1)
    lane_e = jax.lax.broadcasted_iota(jnp.int32, (tm, E), 1)      # (tm, E)
    onehot = (lane_e == idx).astype(jnp.float32)                  # exact 0/1
    table = code_ref[...].astype(jnp.float32)                     # (E, K)
    c = jnp.dot(onehot, table, preferred_element_type=jnp.float32)  # (tm, K)

    # --- Softmax over the codebook axis (B groups of Wc lanes) -------------
    m = _lane_group_reduce(c, jnp.maximum, B, Wc)                 # group max
    ez = jnp.exp(c - m)
    s = _lane_group_reduce(ez, jnp.add, B, Wc)                    # group sum
    p = ez * pl.reciprocal(s, approx=False)                       # (tm, K)

    # --- One fused MXU matmul: contraction over K = B*Wc -------------------
    out_ref[...] = jnp.dot(
        p.astype(book_ref.dtype), book_ref[...],
        preferred_element_type=jnp.float32,
    ).astype(out_ref.dtype)


def compositional_embedding(indices, code, codebook, *, tm_max=4096):
    """indices: (N, W) int; code: (E, B, Wc); codebook: (B, Wc, D)."""
    N, W = indices.shape
    E, B, Wc = code.shape
    Bb, Wcb, D = codebook.shape
    assert (B, Wc) == (Bb, Wcb)
    M = N * W
    K = B * Wc

    tm, M_pad, G = _choose_tiling(M, tm_max)

    idx = indices.reshape(-1).astype(jnp.int32)
    if M_pad != M:
        idx = jnp.pad(idx, (0, M_pad - M))      # padded tokens gather row 0
    idx2 = idx.reshape(M_pad, 1)

    # Free, contiguous reshapes (no data movement):
    code2 = code.reshape(E, K)                  # (E, B*Wc)
    book2 = codebook.reshape(K, D)              # (B*Wc, D)

    kernel = functools.partial(
        _comp_embed_kernel,
        num_codebook=B, num_codeword=Wc, num_embeddings=E)

    out = pl.pallas_call(
        kernel,
        out_shape=jax.ShapeDtypeStruct((M_pad, D), codebook.dtype),
        grid=(G,),
        in_specs=[
            pl.BlockSpec((tm, 1), lambda i: (i, 0)),   # per-tile token ids
            pl.BlockSpec((E, K), lambda i: (0, 0)),    # code table resident
            pl.BlockSpec((K, D), lambda i: (0, 0)),    # codebook resident
        ],
        out_specs=pl.BlockSpec((tm, D), lambda i: (i, 0)),
        compiler_params=pltpu.CompilerParams(
            dimension_semantics=("parallel",),
            vmem_limit_bytes=48 * 1024 * 1024,
        ),
    )(idx2, code2, book2)

    if M_pad != M:
        out = out[:M]
    return out.reshape(N, W, D)


def reference(indices, code, codebook):
    """Pure-JAX reference matching the PyTorch forward (weighted=True)."""
    N = indices.shape[0]
    D = codebook.shape[-1]
    c = code[indices.reshape(-1)]                 # (M, B, Wc)
    p = jax.nn.softmax(c, axis=-2)                # softmax over codebook axis
    out = jnp.einsum("mbw,bwd->md", p, codebook)
    return out.reshape(N, -1, D)


if __name__ == "__main__":
    # Small, deterministic setup.
    num_embeddings = 50
    embedding_dim = 64
    num_codebook = 8
    num_codeword = 16
    N, W = 2, 8                                   # batch=2, seq=8 -> 16 tokens

    key = jax.random.PRNGKey(0)
    k_code, k_book, k_idx = jax.random.split(key, 3)

    # nn.init.normal_ equivalents (standard normal), deterministic.
    code = jax.random.normal(
        k_code, (num_embeddings, num_codebook, num_codeword), dtype=jnp.float32
    )
    codebook = jax.random.normal(
        k_book, (num_codebook, num_codeword, embedding_dim), dtype=jnp.float32
    )
    indices = jax.random.randint(
        k_idx, (N, W), 0, num_embeddings, dtype=jnp.int32
    )

    out = compositional_embedding(indices, code, codebook)
    out = jax.block_until_ready(out)

    ref = reference(indices, code, codebook)
    assert out.shape == (N, W, embedding_dim), out.shape
    assert jnp.allclose(out, ref, atol=1e-4, rtol=1e-4), (
        float(jnp.max(jnp.abs(out - ref)))
    )
    print("KERNEL_OK")
</pallas_src>

<mosaic_0001>
module attributes {stable_mosaic.version = 11 : i64} {
  func.func @_comp_embed_kernel(%arg0: i32, %arg1: memref<8x1xi32, #tpu.memory_space<vmem>>, %arg2: memref<50x128xf32, #tpu.memory_space<vmem>>, %arg3: memref<128x64xf32, #tpu.memory_space<vmem>>, %arg4: memref<8x64xf32, #tpu.memory_space<vmem>>) attributes {dimension_semantics = [#tpu.dimension_semantics<parallel>], iteration_bounds = array<i64: 2>, scalar_prefetch = 0 : i64, scratch_operands = 0 : i64, tpu.core_type = #tpu.core_type<tc>, window_params = [{transform_indices = @transform_0, window_bounds = array<i64: 8, 1>}, {pipeline_mode = #tpu.pipeline_mode<synchronous>, transform_indices = @transform_1, window_bounds = array<i64: 50, 128>}, {pipeline_mode = #tpu.pipeline_mode<synchronous>, transform_indices = @transform_2, window_bounds = array<i64: 128, 64>}, {transform_indices = @transform_3, window_bounds = array<i64: 8, 64>}]} {
    %c0 = arith.constant 0 : index
    %c0_0 = arith.constant 0 : index
    %0 = vector.load %arg1[%c0, %c0_0] : memref<8x1xi32, #tpu.memory_space<vmem>>, vector<8x1xi32>
    %1 = tpu.iota {dimensions = array<i32: 1>} : vector<8x50xi32>
    %2 = vector.broadcast %0 : vector<8x1xi32> to vector<8x50xi32>
    %3 = arith.cmpi eq, %1, %2 : vector<8x50xi32>
    %4 = arith.extui %3 : vector<8x50xi1> to vector<8x50xi32>
    %5 = arith.sitofp %4 : vector<8x50xi32> to vector<8x50xf32>
    %c0_1 = arith.constant 0 : index
    %c0_2 = arith.constant 0 : index
    %6 = vector.load %arg2[%c0_1, %c0_2] : memref<50x128xf32, #tpu.memory_space<vmem>>, vector<50x128xf32>
    %cst = arith.constant dense<0.000000e+00> : vector<8x128xf32>
    %7 = tpu.matmul %5, %6, %cst {dimension_numbers = #tpu.dot_dimension_numbers<[1], [0], [0], [1], [0, 0, 1, 1], [], []>} : vector<8x50xf32>, vector<50x128xf32>, vector<8x128xf32> -> vector<8x128xf32>
    %c16_i32 = arith.constant 16 : i32
    %8 = tpu.dynamic_rotate %7 by %c16_i32 dim 1 : vector<8x128xf32>, i32 -> vector<8x128xf32>
    %9 = arith.maximumf %7, %8 : vector<8x128xf32>
    %c32_i32 = arith.constant 32 : i32
    %10 = tpu.dynamic_rotate %9 by %c32_i32 dim 1 : vector<8x128xf32>, i32 -> vector<8x128xf32>
    %11 = arith.maximumf %9, %10 : vector<8x128xf32>
    %c64_i32 = arith.constant 64 : i32
    %12 = tpu.dynamic_rotate %11 by %c64_i32 dim 1 : vector<8x128xf32>, i32 -> vector<8x128xf32>
    %13 = arith.maximumf %11, %12 : vector<8x128xf32>
    %14 = arith.subf %7, %13 : vector<8x128xf32>
    %15 = math.exp %14 : vector<8x128xf32>
    %c16_i32_3 = arith.constant 16 : i32
    %16 = tpu.dynamic_rotate %15 by %c16_i32_3 dim 1 : vector<8x128xf32>, i32 -> vector<8x128xf32>
    %17 = arith.addf %15, %16 : vector<8x128xf32>
    %c32_i32_4 = arith.constant 32 : i32
    %18 = tpu.dynamic_rotate %17 by %c32_i32_4 dim 1 : vector<8x128xf32>, i32 -> vector<8x128xf32>
    %19 = arith.addf %17, %18 : vector<8x128xf32>
    %c64_i32_5 = arith.constant 64 : i32
    %20 = tpu.dynamic_rotate %19 by %c64_i32_5 dim 1 : vector<8x128xf32>, i32 -> vector<8x128xf32>
    %21 = arith.addf %19, %20 : vector<8x128xf32>
    %22 = tpu.reciprocal %21 : vector<8x128xf32> -> vector<8x128xf32>
    %23 = arith.mulf %15, %22 : vector<8x128xf32>
    %c0_6 = arith.constant 0 : index
    %c0_7 = arith.constant 0 : index
    %24 = vector.load %arg3[%c0_6, %c0_7] : memref<128x64xf32, #tpu.memory_space<vmem>>, vector<128x64xf32>
    %cst_8 = arith.constant dense<0.000000e+00> : vector<8x64xf32>
    %25 = tpu.matmul %23, %24, %cst_8 {dimension_numbers = #tpu.dot_dimension_numbers<[1], [0], [0], [1], [0, 0, 1, 1], [], []>} : vector<8x128xf32>, vector<128x64xf32>, vector<8x64xf32> -> vector<8x64xf32>
    %c0_9 = arith.constant 0 : index
    %c0_10 = arith.constant 0 : index
    %26 = vector.load %arg4[%c0_9, %c0_10] : memref<8x64xf32, #tpu.memory_space<vmem>>, vector<8x64xf32>
    tpu.vector_store %arg4[%c0_9, %c0_10], %25 {strides = array<i32>} : memref<8x64xf32, #tpu.memory_space<vmem>>, vector<8x64xf32>,
    return
  }
  func.func @transform_0(%arg0: i32) -> (i32, i32) {
    %c0_i32 = arith.constant 0 : i32
    %c0_i32_0 = arith.constant 0 : i32
    return %arg0, %c0_i32 : i32, i32
  }
  func.func @transform_1(%arg0: i32) -> (i32, i32) {
    %c0_i32 = arith.constant 0 : i32
    %c0_i32_0 = arith.constant 0 : i32
    %c0_i32_1 = arith.constant 0 : i32
    return %c0_i32, %c0_i32_0 : i32, i32
  }
  func.func @transform_2(%arg0: i32) -> (i32, i32) {
    %c0_i32 = arith.constant 0 : i32
    %c0_i32_0 = arith.constant 0 : i32
    %c0_i32_1 = arith.constant 0 : i32
    return %c0_i32, %c0_i32_0 : i32, i32
  }
  func.func @transform_3(%arg0: i32) -> (i32, i32) {
    %c0_i32 = arith.constant 0 : i32
    %c0_i32_0 = arith.constant 0 : i32
    return %arg0, %c0_i32 : i32, i32
  }
}

</mosaic_0001>

<llo_original>
// kernel: tpu_custom_call.1
$region0: #{tpu_custom_call.1}
  #allocation0 [shape = 'u32[]', space=smem, size = 0x4, offset = 0x4, fixed_abs, tag = 'smem constant byte address 0x4 - core index']
  #allocation1 [shape = 'u32[72,128]{1,0:T(1,128)}', space=vmem, size = 0x9000, scoped, tag = 'internal scratch']
  %s0 = inlined_call_operand.vmem [shape: s32[16,1], index: 0, kind: input, shape index: {}]
  %s1 = inlined_call_operand.vmem [shape: f32[50,128], index: 1, kind: input, shape index: {}]
  %s2 = inlined_call_operand.vmem [shape: f32[128,64], index: 2, kind: input, shape index: {}]
  %s3 = inlined_call_operand.hbm [shape: f32[16,64], index: 3, kind: output, shape index: {}]
  %s4 = sld [smem:[#allocation0]]
  $region45: #{tpu_custom_call.1} parent=0
    _
  %s6 = ssub.s32 1, %s4
  %s7 = scalar_select 0, %s6, %s4
  $region1: #{tpu_custom_call.1} parent=0
    #allocation2 [shape = 'u8[8192]{0}', space=vmem, size = 0x2000, scoped, tag = 'output window, operand 0']
    #allocation3 [shape = 's32[2]{0}', space=sflag, size = 0x8, scoped, tag = 'scoped memory for tpu_custom_call.1']
    %8 = vsyncpa [#allocation3], 0
    %s9 = scalar_lea.sflag [#allocation3], 1
    %10 = vsyncpa %s9, 0
    loop: start=0, step=1, limit=4
    $region2: #{tpu_custom_call.1} parent=1 // loop_pre_header
      _
    $region3: #{tpu_custom_call.1} parent=1 // loop_header
      %s12 = sphi 0, %s16
      %p13 = scmp.ge.s32.totalorder %s12, 4
      %s22 = sphi 0, %s24
      %s25 = sphi 0, %s22
      %s26 = sphi 0, %s25
      %s42 = sphi 0, %s26
      %s46 = sphi 0, %s46
      %s48 = sphi 0, %s46
      %s49 = sphi 0, %s48
      %s63 = sphi 0, %s49
      %s67 = sphi 0, %s67
      %s69 = sphi 0, %s67
      %s70 = sphi 0, %s69
      %s84 = sphi 0, %s70
      %s90 = sphi 0, %s92
      %s93 = sphi 0, %s90
      %s94 = sphi 0, %s93
      %s110 = sphi 0, %s94
    $region4: #{tpu_custom_call.1} parent=1 // loop_header_branch
      %15 = sbr.rel (%p13) target = $region8
    $region5: #{tpu_custom_call.1} parent=1 // loop_body
      %s17 = ssub.s32 %s12, 1
      %s18 = ssub.s32 %s12, 2
      %s19 = sadd.s32 %s12, 1
      %s20 = ssub.s32 %s12, %s19
      %p21 = scmp.eq.s32.totalorder %s20, 0
      %s23 = sadd.s32 %s22, 1
      %s24 = scalar_select %p21, %s22, %s23
      %p27 = pneg %p21
      %p28 = scmp.eq.s32.totalorder %s12, 1
      %p29 = por %p27, %p28
      %p30 = scmp.ne.s32.totalorder %s22, %s25
      %p31 = scmp.eq.s32.totalorder %s12, 0
      %p32 = por %p30, %p31
      %p33 = scmp.ne.s32.totalorder %s22, %s25
      %p34 = scmp.eq.s32.totalorder %s17, 1
      %p35 = por %p33, %p34
      %p36 = scmp.ne.s32.totalorder %s25, %s26
      %p37 = scmp.eq.s32.totalorder %s17, 0
      %p38 = por %p36, %p37
      %p39 = scmp.ne.s32.totalorder %s25, %s26
      %p40 = scmp.eq.s32.totalorder %s18, 1
      %p41 = por %p39, %p40
      %p43 = scmp.ne.s32.totalorder %s26, %s42
      %p44 = scmp.eq.s32.totalorder %s18, 0
      %p45 = por %p43, %p44
      %s47 = sadd.s32 %s46, 1
      %p50 = scmp.eq.s32.totalorder %s12, 1
      %p51 = scmp.ne.s32.totalorder %s46, %s48
      %p52 = scmp.eq.s32.totalorder %s12, 0
      %p53 = por %p51, %p52
      %p54 = scmp.ne.s32.totalorder %s46, %s48
      %p55 = scmp.eq.s32.totalorder %s17, 1
      %p56 = por %p54, %p55
      %p57 = scmp.ne.s32.totalorder %s48, %s49
      %p58 = scmp.eq.s32.totalorder %s17, 0
      %p59 = por %p57, %p58
      %p60 = scmp.ne.s32.totalorder %s48, %s49
      %p61 = scmp.eq.s32.totalorder %s18, 1
      %p62 = por %p60, %p61
      %p64 = scmp.ne.s32.totalorder %s49, %s63
      %p65 = scmp.eq.s32.totalorder %s18, 0
      %p66 = por %p64, %p65
      %s68 = sadd.s32 %s67, 1
      %p71 = scmp.eq.s32.totalorder %s12, 1
      %p72 = scmp.ne.s32.totalorder %s67, %s69
      %p73 = scmp.eq.s32.totalorder %s12, 0
      %p74 = por %p72, %p73
      %p75 = scmp.ne.s32.totalorder %s67, %s69
      %p76 = scmp.eq.s32.totalorder %s17, 1
      %p77 = por %p75, %p76
      %p78 = scmp.ne.s32.totalorder %s69, %s70
      %p79 = scmp.eq.s32.totalorder %s17, 0
      %p80 = por %p78, %p79
      %p81 = scmp.ne.s32.totalorder %s69, %s70
      %p82 = scmp.eq.s32.totalorder %s18, 1
      %p83 = por %p81, %p82
      %p85 = scmp.ne.s32.totalorder %s70, %s84
      %p86 = scmp.eq.s32.totalorder %s18, 0
      %p87 = por %p85, %p86
      %s88 = ssub.s32 %s12, %s19
      %p89 = scmp.eq.s32.totalorder %s88, 0
      %s91 = sadd.s32 %s90, 1
      %s92 = scalar_select %p89, %s90, %s91
      %p95 = pneg %p89
      %p96 = scmp.eq.s32.totalorder %s12, 1
      %p97 = por %p95, %p96
      %p98 = scmp.ne.s32.totalorder %s90, %s93
      %p99 = scmp.eq.s32.totalorder %s12, 0
      %p100 = por %p98, %p99
      %p101 = scmp.ne.s32.totalorder %s90, %s93
      %p102 = scmp.eq.s32.totalorder %s17, 1
      %p103 = por %p101, %p102
      %p104 = scmp.ne.s32.totalorder %s93, %s94
      %p105 = scmp.eq.s32.totalorder %s17, 0
      %p106 = por %p104, %p105
      %p107 = scmp.ne.s32.totalorder %s93, %s94
      %p108 = scmp.eq.s32.totalorder %s18, 1
      %p109 = por %p107, %p108
      %p111 = scmp.ne.s32.totalorder %s94, %s110
      %p112 = scmp.eq.s32.totalorder %s18, 0
      %p113 = por %p111, %p112
      %p114 = scmp.le.s32.totalorder 1, %s12
      %p115 = scmp.lt.s32.totalorder %s12, 3
      %p116 = pnand %p114, %p115
      %p117 = pneg %p116
      // Predicated region
      $region9: #{tpu_custom_call.1} parent=5 // pred_check
        _
      $region10: #{tpu_custom_call.1} parent=5 // pred_check_branch
        %119 = sbr.rel (%p116) target = $region12
      $region11: #{tpu_custom_call.1} parent=5 // pred_region
        %s120 = ssub.s32 %s12, 1
        // Predicated region
        $region13: #{tpu_custom_call.1} parent=11 // pred_check
          %p121 = pneg %p59
        $region14: #{tpu_custom_call.1} parent=11 // pred_check_branch
          %123 = sbr.rel (%p121) target = $region16
        $region15: #{tpu_custom_call.1} parent=11 // pred_region
          _
        $region16: #{tpu_custom_call.1} parent=11 // pred_fallthru
          _
        // Predicated region
        $region17: #{tpu_custom_call.1} parent=11 // pred_check
          %p124 = pneg %p80
        $region18: #{tpu_custom_call.1} parent=11 // pred_check_branch
          %126 = sbr.rel (%p124) target = $region20
        $region19: #{tpu_custom_call.1} parent=11 // pred_region
          _
        $region20: #{tpu_custom_call.1} parent=11 // pred_fallthru
          _
      $region12: #{tpu_custom_call.1} parent=5 // pred_fallthru
        _
      %p127 = scmp.lt.s32.totalorder %s12, 2
      // Predicated region
      $region21: #{tpu_custom_call.1} parent=5 // pred_check
        %p128 = pneg %p127
      $region22: #{tpu_custom_call.1} parent=5 // pred_check_branch
        %130 = sbr.rel (%p128) target = $region24
      $region23: #{tpu_custom_call.1} parent=5 // pred_region
        // Predicated region
        $region25: #{tpu_custom_call.1} parent=23 // pred_check
          %p131 = pneg %p32
        $region26: #{tpu_custom_call.1} parent=23 // pred_check_branch
          %133 = sbr.rel (%p131) target = $region28
        $region27: #{tpu_custom_call.1} parent=23 // pred_region
          %p134 = scmp.lt.s32.totalorder %s12, 1
          %s135 = scalar_select %p134, %s12, 1
          %s136 = smul.addr %s135, 8
          %s137 = scalar_lea.vmem %s0, %s136
        $region28: #{tpu_custom_call.1} parent=23 // pred_fallthru
          _
      $region24: #{tpu_custom_call.1} parent=5 // pred_fallthru
        _
      %p138 = scmp.le.s32.totalorder 1, %s12
      %p139 = scmp.lt.s32.totalorder %s12, 3
      %p140 = pnand %p138, %p139
      %p141 = pneg %p140
      // Predicated region
      $region29: #{tpu_custom_call.1} parent=5 // pred_check
        _
      $region30: #{tpu_custom_call.1} parent=5 // pred_check_branch
        %143 = sbr.rel (%p140) target = $region32
      $region31: #{tpu_custom_call.1} parent=5 // pred_region
        %s144 = ssub.s32 %s12, 1
        %p145 = scmp.lt.s32.totalorder %s17, 1
        %s146 = scalar_select %p145, %s17, 1
        %s147 = smul.addr %s146, 8
        %s148 = scalar_lea.vmem %s0, %s147
        %p149 = pneg %p38
        %p150 = pneg %p35
        %p151 = pneg %p59
        %p152 = pneg %p56
        %p153 = pneg %p80
        %p154 = pneg %p77
        %p155 = pneg %p106
        %p156 = pneg %p103
        %s157 = sand.u32 %s93, 1
        %s158 = scalar_lea.sflag [#allocation3], %s157
        %s159 = sand.u32 %s93, 1
        %s160 = smul.addr %s159, 8
        %s161 = scalar_lea.vmem [#allocation2], %s160
        %p162 = scmp.lt.s32.totalorder %s17, 1
        %s163 = scalar_select %p162, %s17, 1
        %s164 = smul.addr %s163, 8
        %s165 = scalar_lea.vmem %s0, %s164
        %v166 = vld [vmem:[%s165] sm:$0xff]
        %v167 = vlaneseq
        %v168 = vand.u32 %v167, 127
        %169 = vset.pattern.permute.xlu0 0
        %170 = vperm.xlu0 %169, %v166
        %v171 = vpop.permute.xlu0 %170
        %vm172 = vcmp.eq.s32.totalorder %v168, %v171
        %v173 = vsel %vm172, 1, 0
        %v174 = vcvt.s32.f32 %v173
        %v175 = vld [vmem:[%s1] sm:$0xff]
        %v176 = vld [vmem:[%s1 + $0x8] sm:$0xff]
        %v177 = vld [vmem:[%s1 + $0x10] sm:$0xff]
        %v178 = vld [vmem:[%s1 + $0x18] sm:$0xff]
        %v179 = vld [vmem:[%s1 + $0x20] sm:$0xff]
        %v180 = vld [vmem:[%s1 + $0x28] sm:$0xff]
        %v181 = vld [vmem:[%s1 + $0x30] sm:$0x3]
        %vm182 = vcmask 408576
        %v184 = vsel %vm182, %v174, 0
        %vm186 = vcmask 1041408
        %v188 = vsel %vm186, %v181, 0
        %190 = vmatpush.msra.mxu0 0.0
        %191 = vmatpush.msra.mxu0 0.0
        %192 = vmatpush.msra.mxu0 0.0
        %193 = vmatpush.msra.mxu0 0.0
        %194 = vmatpush.msra.mxu0 0.0
        %195 = vmatpush.msra.mxu0 0.0
        %196 = vmatpush.msra.mxu0 0.0
        %197 = vmatpush.msra.mxu0 0.0
        %198 = vmatpush.msra.mxu0 0.0
        %199 = vmatpush.msra.mxu0 %v188
        %200 = vmatpush.msra.mxu0 %v180
        %201 = vmatpush.msra.mxu0 %v179
        %202 = vmatpush.msra.mxu0 %v178
        %203 = vmatpush.msra.mxu0 %v177
        %204 = vmatpush.msra.mxu0 %v176
        %205 = vmatpush.msra.mxu0 %v175
        %206 = vmatmul.f32.gmra.mxu0 %v184
        %v207 = vpop.f32.mrf.mxu0
        %v208 = vadd.f32 0.0, %v207
        %209 = vdwg.mxu0
        %210 = vrot.lane.b32.xlu0 %v208, 16
        %v211 = vpop.permute.xlu0 %210
        %v212 = vmax.f32 %v208, %v211
        %213 = vrot.lane.b32.xlu0 %v212, 32
        %v214 = vpop.permute.xlu0 %213
        %v215 = vmax.f32 %v212, %v214
        %216 = vrot.lane.b32.xlu0 %v215, 64
        %v217 = vpop.permute.xlu0 %216
        %v218 = vmax.f32 %v215, %v217
        %v219 = vsub.f32 %v208, %v218
        %v220 = vmul.f32 %v219, 1.442695
        %v221 = vpow.pop %v220
        %222 = vrot.lane.b32.xlu0 %v221, 16
        %v223 = vpop.permute.xlu0 %222
        %v224 = vadd.f32 %v221, %v223
        %225 = vrot.lane.b32.xlu0 %v224, 32
        %v226 = vpop.permute.xlu0 %225
        %v227 = vadd.f32 %v224, %v226
        %228 = vrot.lane.b32.xlu0 %v227, 64
        %v229 = vpop.permute.xlu0 %228
        %v230 = vadd.f32 %v227, %v229
        %v231 = vrcp.pop %v230
        %v232 = vmul.f32 %v230, %v231
        %v233 = vsub.f32 1.0, %v232
        %v234 = vmul.f32 %v231, %v233
        %v235 = vadd.f32 %v231, %v234
        %vm236 = vweird.f32 %v230
        %vm237 = vweird.f32 %v231
        %vm238 = vmor %vm236, %vm237
        %v239 = vsel %vm238, %v231, %v235
        %v240 = vand.u32 2147483647, %v230
        %vm241 = vcmp.eq.f32.partialorder %v240, 8.507059e+37
        %v242 = vand.u32 %v230, 2147483648
        %v243 = vor.u32 1.1754944e-38, %v242
        %v244 = vsel %vm241, %v243, %v239
        %v245 = vmul.f32 %v221, %v244
        %v246 = vld [vmem:[%s2] sm:$0xff]
        %v247 = vld [vmem:[%s2 + $0x8] sm:$0xff]
        %v248 = vld [vmem:[%s2 + $0x10] sm:$0xff]
        %v249 = vld [vmem:[%s2 + $0x18] sm:$0xff]
        %v250 = vld [vmem:[%s2 + $0x20] sm:$0xff]
        %v251 = vld [vmem:[%s2 + $0x28] sm:$0xff]
        %v252 = vld [vmem:[%s2 + $0x30] sm:$0xff]
        %v253 = vld [vmem:[%s2 + $0x38] sm:$0xff]
        %v254 = vld [vmem:[%s2 + $0x40] sm:$0xff]
        %v255 = vld [vmem:[%s2 + $0x48] sm:$0xff]
        %v256 = vld [vmem:[%s2 + $0x50] sm:$0xff]
        %v257 = vld [vmem:[%s2 + $0x58] sm:$0xff]
        %v258 = vld [vmem:[%s2 + $0x60] sm:$0xff]
        %v259 = vld [vmem:[%s2 + $0x68] sm:$0xff]
        %v260 = vld [vmem:[%s2 + $0x70] sm:$0xff]
        %v261 = vld [vmem:[%s2 + $0x78] sm:$0xff]
        %262 = vmatpush.msra.mxu0 %v261
        %263 = vmatpush.msra.mxu0 %v260
        %264 = vmatpush.msra.mxu0 %v259
        %265 = vmatpush.msra.mxu0 %v258
        %266 = vmatpush.msra.mxu0 %v257
        %267 = vmatpush.msra.mxu0 %v256
        %268 = vmatpush.msra.mxu0 %v255
        %269 = vmatpush.msra.mxu0 %v254
        %270 = vmatpush.msra.mxu0 %v253
        %271 = vmatpush.msra.mxu0 %v252
        %272 = vmatpush.msra.mxu0 %v251
        %273 = vmatpush.msra.mxu0 %v250
        %274 = vmatpush.msra.mxu0 %v249
        %275 = vmatpush.msra.mxu0 %v248
        %276 = vmatpush.msra.mxu0 %v247
        %277 = vmatpush.msra.mxu0 %v246
        %278 = vmatmul.f32.gmra.mxu0 %v245
        %v279 = vpop.f32.mrf.mxu0
        %v280 = vadd.f32 0.0, %v279
        %281 = vdwg.mxu0
        %vm282 = vcmask 523264
        %283 = vst.msk [vmem:[%s161] sm:$0xff] %vm282, %v280
        %s284 = sand.u32 %s93, 1
        %s285 = scalar_lea.sflag [#allocation3], %s284
        %s286 = sand.u32 %s93, 1
        %s287 = smul.addr %s286, 8
        %s288 = scalar_lea.vmem [#allocation2], %s287
        // Predicated region
        $region33: #{tpu_custom_call.1} parent=31 // pred_check
          %p289 = pneg %p103
        $region34: #{tpu_custom_call.1} parent=31 // pred_check_branch
          %291 = sbr.rel (%p289) target = $region36
        $region35: #{tpu_custom_call.1} parent=31 // pred_region
          %293 = vsyncadd %s285, 0
          %s294 = smul.addr %s17, 8
          %s295 = scalar_lea.hbm %s3, %s294
          %s297 = sshll.u32 %s288, 4
          %s298 = int_to_ptr.vmem [resolvable:$true] %s297
          %s299 = sshll.u32 %s295, 4
          %s300 = int_to_ptr.hbm [resolvable:$true] %s299
          %302 = dma.vmem_to_hbm [thread:$0]  %s298, 128, %s300, %s285
        $region36: #{tpu_custom_call.1} parent=31 // pred_fallthru
          _
      $region32: #{tpu_custom_call.1} parent=5 // pred_fallthru
        _
      %p303 = scmp.le.s32.totalorder 2, %s12
      // Predicated region
      $region37: #{tpu_custom_call.1} parent=5 // pred_check
        %p304 = pneg %p303
      $region38: #{tpu_custom_call.1} parent=5 // pred_check_branch
        %306 = sbr.rel (%p304) target = $region40
      $region39: #{tpu_custom_call.1} parent=5 // pred_region
        %s307 = ssub.s32 %s12, 2
        // Predicated region
        $region41: #{tpu_custom_call.1} parent=39 // pred_check
          %p308 = pneg %p109
        $region42: #{tpu_custom_call.1} parent=39 // pred_check_branch
          %310 = sbr.rel (%p308) target = $region44
        $region43: #{tpu_custom_call.1} parent=39 // pred_region
          %s311 = sand.u32 %s94, 1
          %s312 = scalar_lea.sflag [#allocation3], %s311
          %s313 = sand.u32 %s94, 1
          %s314 = smul.addr %s313, 8
          %s315 = scalar_lea.vmem [#allocation2], %s314
          %317 = dma.done %s312, 128
        $region44: #{tpu_custom_call.1} parent=39 // pred_fallthru
          _
      $region40: #{tpu_custom_call.1} parent=5 // pred_fallthru
        _
    $region6: #{tpu_custom_call.1} parent=1 // loop_footer
      %s16 = sadd.s32 1, %s12
    $region7: #{tpu_custom_call.1} parent=1 // loop_footer_branch
      %11 = sbr.rel target = $region3
    $region8: #{tpu_custom_call.1} parent=1 // loop_exit
      _
    %318 = vsyncpa [#allocation3], 1
    %s319 = scalar_lea.sflag [#allocation3], 1
    %320 = vsyncpa %s319, 1

</llo_original>
